<compile_context>
chip_gen: v5e
topology: v5e:2x2
jax: 0.10.0
libtpu: 0.0.40
codegen_flags: <defaults>
</compile_context>

<pallas_src>
import jax
import jax.numpy as jnp
from jax.experimental import pallas as pl
from jax.experimental.pallas import tpu as pltpu

LEAKY_SLOPE = 0.01  # PyTorch nn.LeakyReLU default negative_slope


def _round_up(x, m):
    return ((x + m - 1) // m) * m


def mlp7_kernel(x_ref, *refs):
    """Full MLP forward for one batch tile; weights are VMEM-resident."""
    out_ref = refs[-1]
    wb_refs = refs[:-1]
    n_layers = len(wb_refs) // 2

    h = x_ref[...].astype(jnp.float32)
    for i in range(n_layers):
        w = wb_refs[2 * i][...]          # bf16 (cast in the wrapper)
        b = wb_refs[2 * i + 1][...]      # f32
        # bf16 MXU operands, f32 accumulation; bias-add in f32.
        h = jnp.dot(h.astype(w.dtype), w,
                    preferred_element_type=jnp.float32) + b.astype(jnp.float32)
        if i < n_layers - 1:
            # LeakyReLU (f32 on the VPU)
            h = jnp.where(h > 0, h, LEAKY_SLOPE * h)
        else:
            # Sigmoid (exp + reciprocal go to the EUP)
            h = jax.nn.sigmoid(h)
    out_ref[...] = h.astype(out_ref.dtype)


def mlp7_forward(x, params, *, bm=256):
    """x: [B, F] float32.  params: list of (W [in, out], b [1, out]) float32."""
    B, F = x.shape
    num_classes = params[-1][0].shape[1]

    # ---- batch padding / tile sizing: prefer a single grid step ------------
    B_pad = _round_up(B, 8)
    if B_pad <= bm:
        bm = B_pad                       # one grid step
    else:
        bm = _round_up(bm, 8)
        B_pad = _round_up(B, bm)
    if B_pad != B:
        x = jnp.pad(x, ((0, B_pad - B), (0, 0)))

    # ---- lane-dense output: pad the last layer to >=128 output lanes -------
    out_lanes = _round_up(max(num_classes, 128), 128)
    w_last, b_last = params[-1]
    w_last = jnp.pad(w_last, ((0, 0), (0, out_lanes - num_classes)))
    b_last = jnp.pad(b_last, ((0, 0), (0, out_lanes - num_classes)))
    params = list(params[:-1]) + [(w_last, b_last)]

    grid = (B_pad // bm,)

    flat = []
    in_specs = [pl.BlockSpec((bm, F), lambda i: (i, 0))]  # batch-tiled input
    for (w, b) in params:
        flat.append(w.astype(jnp.bfloat16))   # bf16 weights: MXU-native, half DMA
        flat.append(b.astype(jnp.float32))    # biases stay f32
        # Full-array blocks with constant index -> resident across batch tiles.
        in_specs.append(pl.BlockSpec(w.shape, lambda i: (0, 0)))
        in_specs.append(pl.BlockSpec(b.shape, lambda i: (0, 0)))

    out_spec = pl.BlockSpec((bm, out_lanes), lambda i: (i, 0))

    out = pl.pallas_call(
        mlp7_kernel,
        out_shape=jax.ShapeDtypeStruct((B_pad, out_lanes), jnp.float32),
        grid_spec=pltpu.PrefetchScalarGridSpec(
            num_scalar_prefetch=0,
            grid=grid,
            in_specs=in_specs,
            out_specs=out_spec,
        ),
        compiler_params=pltpu.CompilerParams(
            dimension_semantics=("parallel",),
        ),
    )(x, *flat)

    return out[:B, :num_classes]


def init_params(key, input_size, num_classes=1):
    """Deterministic init mimicking PyTorch nn.Linear default U[-1/sqrt(in), 1/sqrt(in)]."""
    dims = [
        input_size,
        input_size * 5,
        input_size * 5,
        input_size * 5,
        input_size * 5,
        input_size * 2,
        input_size,
        int(input_size / 2),
        num_classes,
    ]
    params = []
    for d_in, d_out in zip(dims[:-1], dims[1:]):
        key, kw, kb = jax.random.split(key, 3)
        bound = 1.0 / jnp.sqrt(jnp.float32(d_in))
        w = jax.random.uniform(kw, (d_in, d_out), jnp.float32, -bound, bound)
        b = jax.random.uniform(kb, (1, d_out), jnp.float32, -bound, bound)
        params.append((w, b))
    return params


def mlp7_reference(x, params, *, bf16_matmul=False):
    """Pure-JAX reference. bf16_matmul=True mirrors the kernel's MXU precision."""
    h = x.astype(jnp.float32)
    n = len(params)
    for i, (w, b) in enumerate(params):
        if bf16_matmul:
            h = jnp.dot(h.astype(jnp.bfloat16), w.astype(jnp.bfloat16),
                        preferred_element_type=jnp.float32) + b
        else:
            h = h @ w + b
        if i < n - 1:
            h = jnp.where(h > 0, h, LEAKY_SLOPE * h)
        else:
            h = jax.nn.sigmoid(h)
    return h


if __name__ == "__main__":
    INPUT_SIZE = 32
    NUM_CLASSES = 1
    BATCH = 16

    key = jax.random.PRNGKey(0)
    key, kx = jax.random.split(key)
    x = jax.random.normal(kx, (BATCH, INPUT_SIZE), jnp.float32)
    params = init_params(key, INPUT_SIZE, NUM_CLASSES)

    out = mlp7_forward(x, params)
    out = jax.block_until_ready(out)
    assert out.shape == (BATCH, NUM_CLASSES)

    # Tight check vs a reference using the same bf16-operand matmul precision.
    ref_bf16 = jax.block_until_ready(mlp7_reference(x, params, bf16_matmul=True))
    assert jnp.allclose(out, ref_bf16, atol=1e-5, rtol=1e-5), \
        "mismatch vs bf16-matmul reference"

    # Loose check vs the full-f32 reference (bf16 matmul quantization only).
    ref_f32 = jax.block_until_ready(mlp7_reference(x, params, bf16_matmul=False))
    assert jnp.allclose(out, ref_f32, atol=5e-3), "mismatch vs f32 reference"

    print("KERNEL_OK")
</pallas_src>

<mosaic_0001>
module attributes {stable_mosaic.version = 11 : i64} {
  func.func @mlp7_kernel(%arg0: i32, %arg1: memref<16x32xf32, #tpu.memory_space<vmem>>, %arg2: memref<32x160xbf16, #tpu.memory_space<vmem>>, %arg3: memref<1x160xf32, #tpu.memory_space<vmem>>, %arg4: memref<160x160xbf16, #tpu.memory_space<vmem>>, %arg5: memref<1x160xf32, #tpu.memory_space<vmem>>, %arg6: memref<160x160xbf16, #tpu.memory_space<vmem>>, %arg7: memref<1x160xf32, #tpu.memory_space<vmem>>, %arg8: memref<160x160xbf16, #tpu.memory_space<vmem>>, %arg9: memref<1x160xf32, #tpu.memory_space<vmem>>, %arg10: memref<160x64xbf16, #tpu.memory_space<vmem>>, %arg11: memref<1x64xf32, #tpu.memory_space<vmem>>, %arg12: memref<64x32xbf16, #tpu.memory_space<vmem>>, %arg13: memref<1x32xf32, #tpu.memory_space<vmem>>, %arg14: memref<32x16xbf16, #tpu.memory_space<vmem>>, %arg15: memref<1x16xf32, #tpu.memory_space<vmem>>, %arg16: memref<16x128xbf16, #tpu.memory_space<vmem>>, %arg17: memref<1x128xf32, #tpu.memory_space<vmem>>, %arg18: memref<16x128xf32, #tpu.memory_space<vmem>>) attributes {dimension_semantics = [#tpu.dimension_semantics<parallel>], iteration_bounds = array<i64: 1>, scalar_prefetch = 0 : i64, scratch_operands = 0 : i64, tpu.core_type = #tpu.core_type<tc>, window_params = [{transform_indices = @transform_0, window_bounds = array<i64: 16, 32>}, {pipeline_mode = #tpu.pipeline_mode<synchronous>, transform_indices = @transform_1, window_bounds = array<i64: 32, 160>}, {pipeline_mode = #tpu.pipeline_mode<synchronous>, transform_indices = @transform_2, window_bounds = array<i64: 1, 160>}, {pipeline_mode = #tpu.pipeline_mode<synchronous>, transform_indices = @transform_3, window_bounds = array<i64: 160, 160>}, {pipeline_mode = #tpu.pipeline_mode<synchronous>, transform_indices = @transform_4, window_bounds = array<i64: 1, 160>}, {pipeline_mode = #tpu.pipeline_mode<synchronous>, transform_indices = @transform_5, window_bounds = array<i64: 160, 160>}, {pipeline_mode = #tpu.pipeline_mode<synchronous>, transform_indices = @transform_6, window_bounds = array<i64: 1, 160>}, {pipeline_mode = #tpu.pipeline_mode<synchronous>, transform_indices = @transform_7, window_bounds = array<i64: 160, 160>}, {pipeline_mode = #tpu.pipeline_mode<synchronous>, transform_indices = @transform_8, window_bounds = array<i64: 1, 160>}, {pipeline_mode = #tpu.pipeline_mode<synchronous>, transform_indices = @transform_9, window_bounds = array<i64: 160, 64>}, {pipeline_mode = #tpu.pipeline_mode<synchronous>, transform_indices = @transform_10, window_bounds = array<i64: 1, 64>}, {pipeline_mode = #tpu.pipeline_mode<synchronous>, transform_indices = @transform_11, window_bounds = array<i64: 64, 32>}, {pipeline_mode = #tpu.pipeline_mode<synchronous>, transform_indices = @transform_12, window_bounds = array<i64: 1, 32>}, {pipeline_mode = #tpu.pipeline_mode<synchronous>, transform_indices = @transform_13, window_bounds = array<i64: 32, 16>}, {pipeline_mode = #tpu.pipeline_mode<synchronous>, transform_indices = @transform_14, window_bounds = array<i64: 1, 16>}, {pipeline_mode = #tpu.pipeline_mode<synchronous>, transform_indices = @transform_15, window_bounds = array<i64: 16, 128>}, {pipeline_mode = #tpu.pipeline_mode<synchronous>, transform_indices = @transform_16, window_bounds = array<i64: 1, 128>}, {transform_indices = @transform_17, window_bounds = array<i64: 16, 128>}]} {
    %c0 = arith.constant 0 : index
    %c0_0 = arith.constant 0 : index
    %0 = vector.load %arg1[%c0, %c0_0] : memref<16x32xf32, #tpu.memory_space<vmem>>, vector<16x32xf32>
    %c0_1 = arith.constant 0 : index
    %c0_2 = arith.constant 0 : index
    %1 = vector.load %arg2[%c0_1, %c0_2] : memref<32x160xbf16, #tpu.memory_space<vmem>>, vector<32x160xbf16>
    %c0_3 = arith.constant 0 : index
    %c0_4 = arith.constant 0 : index
    %2 = vector.load %arg3[%c0_3, %c0_4] : memref<1x160xf32, #tpu.memory_space<vmem>>, vector<1x160xf32>
    %3 = arith.truncf %0 : vector<16x32xf32> to vector<16x32xbf16>
    %cst = arith.constant dense<0.000000e+00> : vector<16x160xf32>
    %4 = tpu.matmul %3, %1, %cst {dimension_numbers = #tpu.dot_dimension_numbers<[1], [0], [0], [1], [0, 0, 1, 1], [], []>} : vector<16x32xbf16>, vector<32x160xbf16>, vector<16x160xf32> -> vector<16x160xf32>
    %5 = vector.broadcast %2 : vector<1x160xf32> to vector<16x160xf32>
    %6 = arith.addf %4, %5 : vector<16x160xf32>
    %cst_5 = arith.constant 0.000000e+00 : f32
    %7 = vector.broadcast %cst_5 : f32 to vector<16x160xf32>
    %8 = arith.cmpf ogt, %6, %7 : vector<16x160xf32>
    %cst_6 = arith.constant 0.00999999977 : f32
    %9 = vector.broadcast %cst_6 : f32 to vector<16x160xf32>
    %10 = arith.mulf %9, %6 : vector<16x160xf32>
    %11 = arith.select %8, %6, %10 : vector<16x160xi1>, vector<16x160xf32>
    %c0_7 = arith.constant 0 : index
    %c0_8 = arith.constant 0 : index
    %12 = vector.load %arg4[%c0_7, %c0_8] : memref<160x160xbf16, #tpu.memory_space<vmem>>, vector<160x160xbf16>
    %c0_9 = arith.constant 0 : index
    %c0_10 = arith.constant 0 : index
    %13 = vector.load %arg5[%c0_9, %c0_10] : memref<1x160xf32, #tpu.memory_space<vmem>>, vector<1x160xf32>
    %14 = arith.truncf %11 : vector<16x160xf32> to vector<16x160xbf16>
    %cst_11 = arith.constant dense<0.000000e+00> : vector<16x160xf32>
    %15 = tpu.matmul %14, %12, %cst_11 {dimension_numbers = #tpu.dot_dimension_numbers<[1], [0], [0], [1], [0, 0, 1, 1], [], []>} : vector<16x160xbf16>, vector<160x160xbf16>, vector<16x160xf32> -> vector<16x160xf32>
    %16 = vector.broadcast %13 : vector<1x160xf32> to vector<16x160xf32>
    %17 = arith.addf %15, %16 : vector<16x160xf32>
    %cst_12 = arith.constant 0.000000e+00 : f32
    %18 = vector.broadcast %cst_12 : f32 to vector<16x160xf32>
    %19 = arith.cmpf ogt, %17, %18 : vector<16x160xf32>
    %cst_13 = arith.constant 0.00999999977 : f32
    %20 = vector.broadcast %cst_13 : f32 to vector<16x160xf32>
    %21 = arith.mulf %20, %17 : vector<16x160xf32>
    %22 = arith.select %19, %17, %21 : vector<16x160xi1>, vector<16x160xf32>
    %c0_14 = arith.constant 0 : index
    %c0_15 = arith.constant 0 : index
    %23 = vector.load %arg6[%c0_14, %c0_15] : memref<160x160xbf16, #tpu.memory_space<vmem>>, vector<160x160xbf16>
    %c0_16 = arith.constant 0 : index
    %c0_17 = arith.constant 0 : index
    %24 = vector.load %arg7[%c0_16, %c0_17] : memref<1x160xf32, #tpu.memory_space<vmem>>, vector<1x160xf32>
    %25 = arith.truncf %22 : vector<16x160xf32> to vector<16x160xbf16>
    %cst_18 = arith.constant dense<0.000000e+00> : vector<16x160xf32>
    %26 = tpu.matmul %25, %23, %cst_18 {dimension_numbers = #tpu.dot_dimension_numbers<[1], [0], [0], [1], [0, 0, 1, 1], [], []>} : vector<16x160xbf16>, vector<160x160xbf16>, vector<16x160xf32> -> vector<16x160xf32>
    %27 = vector.broadcast %24 : vector<1x160xf32> to vector<16x160xf32>
    %28 = arith.addf %26, %27 : vector<16x160xf32>
    %cst_19 = arith.constant 0.000000e+00 : f32
    %29 = vector.broadcast %cst_19 : f32 to vector<16x160xf32>
    %30 = arith.cmpf ogt, %28, %29 : vector<16x160xf32>
    %cst_20 = arith.constant 0.00999999977 : f32
    %31 = vector.broadcast %cst_20 : f32 to vector<16x160xf32>
    %32 = arith.mulf %31, %28 : vector<16x160xf32>
    %33 = arith.select %30, %28, %32 : vector<16x160xi1>, vector<16x160xf32>
    %c0_21 = arith.constant 0 : index
    %c0_22 = arith.constant 0 : index
    %34 = vector.load %arg8[%c0_21, %c0_22] : memref<160x160xbf16, #tpu.memory_space<vmem>>, vector<160x160xbf16>
    %c0_23 = arith.constant 0 : index
    %c0_24 = arith.constant 0 : index
    %35 = vector.load %arg9[%c0_23, %c0_24] : memref<1x160xf32, #tpu.memory_space<vmem>>, vector<1x160xf32>
    %36 = arith.truncf %33 : vector<16x160xf32> to vector<16x160xbf16>
    %cst_25 = arith.constant dense<0.000000e+00> : vector<16x160xf32>
    %37 = tpu.matmul %36, %34, %cst_25 {dimension_numbers = #tpu.dot_dimension_numbers<[1], [0], [0], [1], [0, 0, 1, 1], [], []>} : vector<16x160xbf16>, vector<160x160xbf16>, vector<16x160xf32> -> vector<16x160xf32>
    %38 = vector.broadcast %35 : vector<1x160xf32> to vector<16x160xf32>
    %39 = arith.addf %37, %38 : vector<16x160xf32>
    %cst_26 = arith.constant 0.000000e+00 : f32
    %40 = vector.broadcast %cst_26 : f32 to vector<16x160xf32>
    %41 = arith.cmpf ogt, %39, %40 : vector<16x160xf32>
    %cst_27 = arith.constant 0.00999999977 : f32
    %42 = vector.broadcast %cst_27 : f32 to vector<16x160xf32>
    %43 = arith.mulf %42, %39 : vector<16x160xf32>
    %44 = arith.select %41, %39, %43 : vector<16x160xi1>, vector<16x160xf32>
    %c0_28 = arith.constant 0 : index
    %c0_29 = arith.constant 0 : index
    %45 = vector.load %arg10[%c0_28, %c0_29] : memref<160x64xbf16, #tpu.memory_space<vmem>>, vector<160x64xbf16>
    %c0_30 = arith.constant 0 : index
    %c0_31 = arith.constant 0 : index
    %46 = vector.load %arg11[%c0_30, %c0_31] : memref<1x64xf32, #tpu.memory_space<vmem>>, vector<1x64xf32>
    %47 = arith.truncf %44 : vector<16x160xf32> to vector<16x160xbf16>
    %cst_32 = arith.constant dense<0.000000e+00> : vector<16x64xf32>
    %48 = tpu.matmul %47, %45, %cst_32 {dimension_numbers = #tpu.dot_dimension_numbers<[1], [0], [0], [1], [0, 0, 1, 1], [], []>} : vector<16x160xbf16>, vector<160x64xbf16>, vector<16x64xf32> -> vector<16x64xf32>
    %49 = vector.broadcast %46 : vector<1x64xf32> to vector<16x64xf32>
    %50 = arith.addf %48, %49 : vector<16x64xf32>
    %cst_33 = arith.constant 0.000000e+00 : f32
    %51 = vector.broadcast %cst_33 : f32 to vector<16x64xf32>
    %52 = arith.cmpf ogt, %50, %51 : vector<16x64xf32>
    %cst_34 = arith.constant 0.00999999977 : f32
    %53 = vector.broadcast %cst_34 : f32 to vector<16x64xf32>
    %54 = arith.mulf %53, %50 : vector<16x64xf32>
    %55 = arith.select %52, %50, %54 : vector<16x64xi1>, vector<16x64xf32>
    %c0_35 = arith.constant 0 : index
    %c0_36 = arith.constant 0 : index
    %56 = vector.load %arg12[%c0_35, %c0_36] : memref<64x32xbf16, #tpu.memory_space<vmem>>, vector<64x32xbf16>
    %c0_37 = arith.constant 0 : index
    %c0_38 = arith.constant 0 : index
    %57 = vector.load %arg13[%c0_37, %c0_38] : memref<1x32xf32, #tpu.memory_space<vmem>>, vector<1x32xf32>
    %58 = arith.truncf %55 : vector<16x64xf32> to vector<16x64xbf16>
    %cst_39 = arith.constant dense<0.000000e+00> : vector<16x32xf32>
    %59 = tpu.matmul %58, %56, %cst_39 {dimension_numbers = #tpu.dot_dimension_numbers<[1], [0], [0], [1], [0, 0, 1, 1], [], []>} : vector<16x64xbf16>, vector<64x32xbf16>, vector<16x32xf32> -> vector<16x32xf32>
    %60 = vector.broadcast %57 : vector<1x32xf32> to vector<16x32xf32>
    %61 = arith.addf %59, %60 : vector<16x32xf32>
    %cst_40 = arith.constant 0.000000e+00 : f32
    %62 = vector.broadcast %cst_40 : f32 to vector<16x32xf32>
    %63 = arith.cmpf ogt, %61, %62 : vector<16x32xf32>
    %cst_41 = arith.constant 0.00999999977 : f32
    %64 = vector.broadcast %cst_41 : f32 to vector<16x32xf32>
    %65 = arith.mulf %64, %61 : vector<16x32xf32>
    %66 = arith.select %63, %61, %65 : vector<16x32xi1>, vector<16x32xf32>
    %c0_42 = arith.constant 0 : index
    %c0_43 = arith.constant 0 : index
    %67 = vector.load %arg14[%c0_42, %c0_43] : memref<32x16xbf16, #tpu.memory_space<vmem>>, vector<32x16xbf16>
    %c0_44 = arith.constant 0 : index
    %c0_45 = arith.constant 0 : index
    %68 = vector.load %arg15[%c0_44, %c0_45] : memref<1x16xf32, #tpu.memory_space<vmem>>, vector<1x16xf32>
    %69 = arith.truncf %66 : vector<16x32xf32> to vector<16x32xbf16>
    %cst_46 = arith.constant dense<0.000000e+00> : vector<16x16xf32>
    %70 = tpu.matmul %69, %67, %cst_46 {dimension_numbers = #tpu.dot_dimension_numbers<[1], [0], [0], [1], [0, 0, 1, 1], [], []>} : vector<16x32xbf16>, vector<32x16xbf16>, vector<16x16xf32> -> vector<16x16xf32>
    %71 = vector.broadcast %68 : vector<1x16xf32> to vector<16x16xf32>
    %72 = arith.addf %70, %71 : vector<16x16xf32>
    %cst_47 = arith.constant 0.000000e+00 : f32
    %73 = vector.broadcast %cst_47 : f32 to vector<16x16xf32>
    %74 = arith.cmpf ogt, %72, %73 : vector<16x16xf32>
    %cst_48 = arith.constant 0.00999999977 : f32
    %75 = vector.broadcast %cst_48 : f32 to vector<16x16xf32>
    %76 = arith.mulf %75, %72 : vector<16x16xf32>
    %77 = arith.select %74, %72, %76 : vector<16x16xi1>, vector<16x16xf32>
    %c0_49 = arith.constant 0 : index
    %c0_50 = arith.constant 0 : index
    %78 = vector.load %arg16[%c0_49, %c0_50] : memref<16x128xbf16, #tpu.memory_space<vmem>>, vector<16x128xbf16>
    %c0_51 = arith.constant 0 : index
    %c0_52 = arith.constant 0 : index
    %79 = vector.load %arg17[%c0_51, %c0_52] : memref<1x128xf32, #tpu.memory_space<vmem>>, vector<1x128xf32>
    %80 = arith.truncf %77 : vector<16x16xf32> to vector<16x16xbf16>
    %cst_53 = arith.constant dense<0.000000e+00> : vector<16x128xf32>
    %81 = tpu.matmul %80, %78, %cst_53 {dimension_numbers = #tpu.dot_dimension_numbers<[1], [0], [0], [1], [0, 0, 1, 1], [], []>} : vector<16x16xbf16>, vector<16x128xbf16>, vector<16x128xf32> -> vector<16x128xf32>
    %82 = vector.broadcast %79 : vector<1x128xf32> to vector<16x128xf32>
    %83 = arith.addf %81, %82 : vector<16x128xf32>
    %84 = arith.negf %83 : vector<16x128xf32>
    %85 = math.exp %84 : vector<16x128xf32>
    %cst_54 = arith.constant 1.000000e+00 : f32
    %86 = vector.broadcast %cst_54 : f32 to vector<16x128xf32>
    %87 = arith.addf %86, %85 : vector<16x128xf32>
    %88 = arith.divf %86, %87 : vector<16x128xf32>
    %c0_55 = arith.constant 0 : index
    %c0_56 = arith.constant 0 : index
    %89 = vector.load %arg18[%c0_55, %c0_56] : memref<16x128xf32, #tpu.memory_space<vmem>>, vector<16x128xf32>
    tpu.vector_store %arg18[%c0_55, %c0_56], %88 {strides = array<i32>} : memref<16x128xf32, #tpu.memory_space<vmem>>, vector<16x128xf32>,
    return
  }
  func.func @transform_0(%arg0: i32) -> (i32, i32) {
    %c0_i32 = arith.constant 0 : i32
    %c0_i32_0 = arith.constant 0 : i32
    return %arg0, %c0_i32 : i32, i32
  }
  func.func @transform_1(%arg0: i32) -> (i32, i32) {
    %c0_i32 = arith.constant 0 : i32
    %c0_i32_0 = arith.constant 0 : i32
    %c0_i32_1 = arith.constant 0 : i32
    return %c0_i32, %c0_i32_0 : i32, i32
  }
  func.func @transform_2(%arg0: i32) -> (i32, i32) {
    %c0_i32 = arith.constant 0 : i32
    %c0_i32_0 = arith.constant 0 : i32
    %c0_i32_1 = arith.constant 0 : i32
    return %c0_i32, %c0_i32_0 : i32, i32
  }
  func.func @transform_3(%arg0: i32) -> (i32, i32) {
    %c0_i32 = arith.constant 0 : i32
    %c0_i32_0 = arith.constant 0 : i32
    %c0_i32_1 = arith.constant 0 : i32
    return %c0_i32, %c0_i32_0 : i32, i32
  }
  func.func @transform_4(%arg0: i32) -> (i32, i32) {
    %c0_i32 = arith.constant 0 : i32
    %c0_i32_0 = arith.constant 0 : i32
    %c0_i32_1 = arith.constant 0 : i32
    return %c0_i32, %c0_i32_0 : i32, i32
  }
  func.func @transform_5(%arg0: i32) -> (i32, i32) {
    %c0_i32 = arith.constant 0 : i32
    %c0_i32_0 = arith.constant 0 : i32
    %c0_i32_1 = arith.constant 0 : i32
    return %c0_i32, %c0_i32_0 : i32, i32
  }
  func.func @transform_6(%arg0: i32) -> (i32, i32) {
    %c0_i32 = arith.constant 0 : i32
    %c0_i32_0 = arith.constant 0 : i32
    %c0_i32_1 = arith.constant 0 : i32
    return %c0_i32, %c0_i32_0 : i32, i32
  }
  func.func @transform_7(%arg0: i32) -> (i32, i32) {
    %c0_i32 = arith.constant 0 : i32
    %c0_i32_0 = arith.constant 0 : i32
    %c0_i32_1 = arith.constant 0 : i32
    return %c0_i32, %c0_i32_0 : i32, i32
  }
  func.func @transform_8(%arg0: i32) -> (i32, i32) {
    %c0_i32 = arith.constant 0 : i32
    %c0_i32_0 = arith.constant 0 : i32
    %c0_i32_1 = arith.constant 0 : i32
    return %c0_i32, %c0_i32_0 : i32, i32
  }
  func.func @transform_9(%arg0: i32) -> (i32, i32) {
    %c0_i32 = arith.constant 0 : i32
    %c0_i32_0 = arith.constant 0 : i32
    %c0_i32_1 = arith.constant 0 : i32
    return %c0_i32, %c0_i32_0 : i32, i32
  }
  func.func @transform_10(%arg0: i32) -> (i32, i32) {
    %c0_i32 = arith.constant 0 : i32
    %c0_i32_0 = arith.constant 0 : i32
    %c0_i32_1 = arith.constant 0 : i32
    return %c0_i32, %c0_i32_0 : i32, i32
  }
  func.func @transform_11(%arg0: i32) -> (i32, i32) {
    %c0_i32 = arith.constant 0 : i32
    %c0_i32_0 = arith.constant 0 : i32
    %c0_i32_1 = arith.constant 0 : i32
    return %c0_i32, %c0_i32_0 : i32, i32
  }
  func.func @transform_12(%arg0: i32) -> (i32, i32) {
    %c0_i32 = arith.constant 0 : i32
    %c0_i32_0 = arith.constant 0 : i32
    %c0_i32_1 = arith.constant 0 : i32
    return %c0_i32, %c0_i32_0 : i32, i32
  }
  func.func @transform_13(%arg0: i32) -> (i32, i32) {
    %c0_i32 = arith.constant 0 : i32
    %c0_i32_0 = arith.constant 0 : i32
    %c0_i32_1 = arith.constant 0 : i32
    return %c0_i32, %c0_i32_0 : i32, i32
  }
  func.func @transform_14(%arg0: i32) -> (i32, i32) {
    %c0_i32 = arith.constant 0 : i32
    %c0_i32_0 = arith.constant 0 : i32
    %c0_i32_1 = arith.constant 0 : i32
    return %c0_i32, %c0_i32_0 : i32, i32
  }
  func.func @transform_15(%arg0: i32) -> (i32, i32) {
    %c0_i32 = arith.constant 0 : i32
    %c0_i32_0 = arith.constant 0 : i32
    %c0_i32_1 = arith.constant 0 : i32
    return %c0_i32, %c0_i32_0 : i32, i32
  }
  func.func @transform_16(%arg0: i32) -> (i32, i32) {
    %c0_i32 = arith.constant 0 : i32
    %c0_i32_0 = arith.constant 0 : i32
    %c0_i32_1 = arith.constant 0 : i32
    return %c0_i32, %c0_i32_0 : i32, i32
  }
  func.func @transform_17(%arg0: i32) -> (i32, i32) {
    %c0_i32 = arith.constant 0 : i32
    %c0_i32_0 = arith.constant 0 : i32
    return %arg0, %c0_i32 : i32, i32
  }
}

</mosaic_0001>

<llo_original>
// kernel: tpu_custom_call.1
$region0: #{tpu_custom_call.1}
  #allocation0 [shape = 'u32[]', space=smem, size = 0x4, offset = 0x4, fixed_abs, tag = 'smem constant byte address 0x4 - core index']
  #allocation1 [shape = 'u32[72,128]{1,0:T(1,128)}', space=vmem, size = 0x9000, scoped, tag = 'internal scratch']
  %s0 = inlined_call_operand.vmem [shape: f32[16,32], index: 0, kind: input, shape index: {}]
  %s1 = inlined_call_operand.vmem [shape: bf16[32,160], index: 1, kind: input, shape index: {}]
  %s2 = inlined_call_operand.vmem [shape: f32[1,160], index: 2, kind: input, shape index: {}]
  %s3 = inlined_call_operand.hbm [shape: bf16[160,160], index: 3, kind: input, shape index: {}]
  %s4 = inlined_call_operand.vmem [shape: f32[1,160], index: 4, kind: input, shape index: {}]
  %s5 = inlined_call_operand.hbm [shape: bf16[160,160], index: 5, kind: input, shape index: {}]
  %s6 = inlined_call_operand.vmem [shape: f32[1,160], index: 6, kind: input, shape index: {}]
  %s7 = inlined_call_operand.hbm [shape: bf16[160,160], index: 7, kind: input, shape index: {}]
  %s8 = inlined_call_operand.vmem [shape: f32[1,160], index: 8, kind: input, shape index: {}]
  %s9 = inlined_call_operand.vmem [shape: bf16[160,64], index: 9, kind: input, shape index: {}]
  %s10 = inlined_call_operand.vmem [shape: f32[1,64], index: 10, kind: input, shape index: {}]
  %s11 = inlined_call_operand.vmem [shape: bf16[64,32], index: 11, kind: input, shape index: {}]
  %s12 = inlined_call_operand.vmem [shape: f32[1,32], index: 12, kind: input, shape index: {}]
  %s13 = inlined_call_operand.vmem [shape: bf16[32,16], index: 13, kind: input, shape index: {}]
  %s14 = inlined_call_operand.vmem [shape: f32[1,16], index: 14, kind: input, shape index: {}]
  %s15 = inlined_call_operand.vmem [shape: bf16[16,128], index: 15, kind: input, shape index: {}]
  %s16 = inlined_call_operand.vmem [shape: f32[1,128], index: 16, kind: input, shape index: {}]
  %s17 = inlined_call_operand.hbm [shape: f32[16,128], index: 17, kind: output, shape index: {}]
  %s18 = sld [smem:[#allocation0]]
  $region90: #{tpu_custom_call.1} parent=0
    _
  %s20 = ssub.s32 1, %s18
  %s21 = scalar_select 0, %s20, %s18
  $region1: #{tpu_custom_call.1} parent=0
    #allocation2 [shape = 'u8[81920]{0}', space=vmem, size = 0x14000, scoped, tag = 'input window, operand 3, single buffered']
    #allocation3 [shape = 's32[1]{0}', space=sflag, size = 0x4, scoped, tag = 'scoped memory for tpu_custom_call.1']
    #allocation4 [shape = 's32[1]{0}', space=sflag, size = 0x4, scoped, tag = 'scoped memory for tpu_custom_call.1']
    #allocation5 [shape = 'u8[81920]{0}', space=vmem, size = 0x14000, scoped, tag = 'input window, operand 5, single buffered']
    #allocation6 [shape = 's32[1]{0}', space=sflag, size = 0x4, scoped, tag = 'scoped memory for tpu_custom_call.1']
    #allocation7 [shape = 'u8[81920]{0}', space=vmem, size = 0x14000, scoped, tag = 'input window, operand 7, single buffered']
    #allocation8 [shape = 'u8[8192]{0}', space=vmem, size = 0x2000, scoped, tag = 'output window, operand 0, single buffered']
    %22 = vsyncpa [#allocation3], 0
    %23 = vsyncpa [#allocation6], 0
    %24 = vsyncpa [#allocation4], 0
    // Predicated region
    $region2: #{tpu_custom_call.1} parent=1 // pred_check
      _
    $region3: #{tpu_custom_call.1} parent=1 // pred_check_branch
      %26 = sbr.rel (0) target = $region5
    $region4: #{tpu_custom_call.1} parent=1 // pred_region
      _
    $region5: #{tpu_custom_call.1} parent=1 // pred_fallthru
      _
    // Predicated region
    $region6: #{tpu_custom_call.1} parent=1 // pred_check
      _
    $region7: #{tpu_custom_call.1} parent=1 // pred_check_branch
      %28 = sbr.rel (0) target = $region9
    $region8: #{tpu_custom_call.1} parent=1 // pred_region
      _
    $region9: #{tpu_custom_call.1} parent=1 // pred_fallthru
      _
    // Predicated region
    $region10: #{tpu_custom_call.1} parent=1 // pred_check
      _
    $region11: #{tpu_custom_call.1} parent=1 // pred_check_branch
      %30 = sbr.rel (0) target = $region13
    $region12: #{tpu_custom_call.1} parent=1 // pred_region
      _
    $region13: #{tpu_custom_call.1} parent=1 // pred_fallthru
      _
    // Predicated region
    $region14: #{tpu_custom_call.1} parent=1 // pred_check
      _
    $region15: #{tpu_custom_call.1} parent=1 // pred_check_branch
      %32 = sbr.rel (0) target = $region17
    $region16: #{tpu_custom_call.1} parent=1 // pred_region
      %34 = vsyncadd [#allocation3], 0
      %s35 = sshll.u32 %s3, 4
      %s36 = int_to_ptr.hbm [resolvable:$true] %s35
      %s37 = sshll.u32 [#allocation2], 4
      %s38 = int_to_ptr.vmem [resolvable:$true] %s37
      %43 = dma.hbm_to_vmem [thread:$0]  %s36, 2560, %s38, [#allocation3], 128, 128, 8
    $region17: #{tpu_custom_call.1} parent=1 // pred_fallthru
      _
    // Predicated region
    $region18: #{tpu_custom_call.1} parent=1 // pred_check
      _
    $region19: #{tpu_custom_call.1} parent=1 // pred_check_branch
      %45 = sbr.rel (0) target = $region21
    $region20: #{tpu_custom_call.1} parent=1 // pred_region
      _
    $region21: #{tpu_custom_call.1} parent=1 // pred_fallthru
      _
    // Predicated region
    $region22: #{tpu_custom_call.1} parent=1 // pred_check
      _
    $region23: #{tpu_custom_call.1} parent=1 // pred_check_branch
      %47 = sbr.rel (0) target = $region25
    $region24: #{tpu_custom_call.1} parent=1 // pred_region
      %49 = vsyncadd [#allocation6], 0
      %s50 = sshll.u32 %s5, 4
      %s51 = int_to_ptr.hbm [resolvable:$true] %s50
      %s52 = sshll.u32 [#allocation5], 4
      %s53 = int_to_ptr.vmem [resolvable:$true] %s52
      %58 = dma.hbm_to_vmem [thread:$0]  %s51, 2560, %s53, [#allocation6], 128, 128, 8
    $region25: #{tpu_custom_call.1} parent=1 // pred_fallthru
      _
    // Predicated region
    $region26: #{tpu_custom_call.1} parent=1 // pred_check
      _
    $region27: #{tpu_custom_call.1} parent=1 // pred_check_branch
      %60 = sbr.rel (0) target = $region29
    $region28: #{tpu_custom_call.1} parent=1 // pred_region
      _
    $region29: #{tpu_custom_call.1} parent=1 // pred_fallthru
      _
    // Predicated region
    $region30: #{tpu_custom_call.1} parent=1 // pred_check
      _
    $region31: #{tpu_custom_call.1} parent=1 // pred_check_branch
      %62 = sbr.rel (0) target = $region33
    $region32: #{tpu_custom_call.1} parent=1 // pred_region
      %64 = vsyncadd [#allocation6], 0
      %s65 = sshll.u32 %s7, 4
      %s66 = int_to_ptr.hbm [resolvable:$true] %s65
      %s67 = sshll.u32 [#allocation7], 4
      %s68 = int_to_ptr.vmem [resolvable:$true] %s67
      %73 = dma.hbm_to_vmem [thread:$0]  %s66, 2560, %s68, [#allocation6], 128, 128, 8
    $region33: #{tpu_custom_call.1} parent=1 // pred_fallthru
      _
    // Predicated region
    $region34: #{tpu_custom_call.1} parent=1 // pred_check
      _
    $region35: #{tpu_custom_call.1} parent=1 // pred_check_branch
      %75 = sbr.rel (0) target = $region37
    $region36: #{tpu_custom_call.1} parent=1 // pred_region
      _
    $region37: #{tpu_custom_call.1} parent=1 // pred_fallthru
      _
    // Predicated region
    $region38: #{tpu_custom_call.1} parent=1 // pred_check
      _
    $region39: #{tpu_custom_call.1} parent=1 // pred_check_branch
      %77 = sbr.rel (0) target = $region41
    $region40: #{tpu_custom_call.1} parent=1 // pred_region
      _
    $region41: #{tpu_custom_call.1} parent=1 // pred_fallthru
      _
    // Predicated region
    $region42: #{tpu_custom_call.1} parent=1 // pred_check
      _
    $region43: #{tpu_custom_call.1} parent=1 // pred_check_branch
      %79 = sbr.rel (0) target = $region45
    $region44: #{tpu_custom_call.1} parent=1 // pred_region
      _
    $region45: #{tpu_custom_call.1} parent=1 // pred_fallthru
      _
    // Predicated region
    $region46: #{tpu_custom_call.1} parent=1 // pred_check
      _
    $region47: #{tpu_custom_call.1} parent=1 // pred_check_branch
      %81 = sbr.rel (0) target = $region49
    $region48: #{tpu_custom_call.1} parent=1 // pred_region
      _
    $region49: #{tpu_custom_call.1} parent=1 // pred_fallthru
      _
    // Predicated region
    $region50: #{tpu_custom_call.1} parent=1 // pred_check
      _
    $region51: #{tpu_custom_call.1} parent=1 // pred_check_branch
      %83 = sbr.rel (0) target = $region53
    $region52: #{tpu_custom_call.1} parent=1 // pred_region
      _
    $region53: #{tpu_custom_call.1} parent=1 // pred_fallthru
      _
    // Predicated region
    $region54: #{tpu_custom_call.1} parent=1 // pred_check
      _
    $region55: #{tpu_custom_call.1} parent=1 // pred_check_branch
      %85 = sbr.rel (0) target = $region57
    $region56: #{tpu_custom_call.1} parent=1 // pred_region
      _
    $region57: #{tpu_custom_call.1} parent=1 // pred_fallthru
      _
    // Predicated region
    $region58: #{tpu_custom_call.1} parent=1 // pred_check
      _
    $region59: #{tpu_custom_call.1} parent=1 // pred_check_branch
      %87 = sbr.rel (0) target = $region61
    $region60: #{tpu_custom_call.1} parent=1 // pred_region
      _
    $region61: #{tpu_custom_call.1} parent=1 // pred_fallthru
      _
    // Predicated region
    $region62: #{tpu_custom_call.1} parent=1 // pred_check
      _
    $region63: #{tpu_custom_call.1} parent=1 // pred_check_branch
      %89 = sbr.rel (0) target = $region65
    $region64: #{tpu_custom_call.1} parent=1 // pred_region
      _
    $region65: #{tpu_custom_call.1} parent=1 // pred_fallthru
      _
    // Predicated region
    $region66: #{tpu_custom_call.1} parent=1 // pred_check
      _
    $region67: #{tpu_custom_call.1} parent=1 // pred_check_branch
      %91 = sbr.rel (0) target = $region69
    $region68: #{tpu_custom_call.1} parent=1 // pred_region
      _
    $region69: #{tpu_custom_call.1} parent=1 // pred_fallthru
      _
    // Predicated region
    $region70: #{tpu_custom_call.1} parent=1 // pred_check
      _
    $region71: #{tpu_custom_call.1} parent=1 // pred_check_branch
      %93 = sbr.rel (0) target = $region73
    $region72: #{tpu_custom_call.1} parent=1 // pred_region
      %95 = dma.done [#allocation3], 2560
    $region73: #{tpu_custom_call.1} parent=1 // pred_fallthru
      _
    // Predicated region
    $region74: #{tpu_custom_call.1} parent=1 // pred_check
      _
    $region75: #{tpu_custom_call.1} parent=1 // pred_check_branch
      %97 = sbr.rel (0) target = $region77
    $region76: #{tpu_custom_call.1} parent=1 // pred_region
      %99 = dma.done [#allocation6], 2560
    $region77: #{tpu_custom_call.1} parent=1 // pred_fallthru
      _
    // Predicated region
    $region78: #{tpu_custom_call.1} parent=1 // pred_check
      _
    $region79: #{tpu_custom_call.1} parent=1 // pred_check_branch
      %101 = sbr.rel (0) target = $region81
    $region80: #{tpu_custom_call.1} parent=1 // pred_region
      %103 = dma.done [#allocation6], 2560
    $region81: #{tpu_custom_call.1} parent=1 // pred_fallthru
      _
    %v105 = vld [vmem:[%s0] sm:$0xff]
    %v106 = vld [vmem:[%s0 + $0x8] sm:$0xff]
    %v107 = vld [vmem:[%s1] sm:$0xff]
    %v108 = vld [vmem:[%s1 + $0x8] sm:$0xff]
    %v109 = vld [vmem:[%s1 + $0x10] sm:$0xff]
    %v110 = vld [vmem:[%s1 + $0x18] sm:$0xff]
    %v111 = vld [vmem:[%s2] sm:$0x3]
    %v112 = vpack.c.bf16 %v106, %v105
    %v114 = vperm.slane %v111, 0
    %v115 = vperm.slane %v111, 1
    %v122 = vunpack.c.l.b16 %v107
    %v123 = vunpack.c.h.b16 %v107
    %v124 = vunpack.c.l.b16 %v108
    %v125 = vunpack.c.h.b16 %v108
    %v126 = vunpack.c.l.b16 %v109
    %v127 = vunpack.c.h.b16 %v109
    %v128 = vunpack.c.l.b16 %v110
    %v129 = vunpack.c.h.b16 %v110
    %v130 = vpack.c.b16 %v124, %v122
    %v131 = vpack.c.b16 %v125, %v123
    %v132 = vpack.c.b16 %v128, %v126
    %v133 = vpack.c.b16 %v129, %v127
    %vm138 = vcmask 261120
    %v140 = vsel %vm138, %v112, 0
    %142 = vmatpush.bf16.msra.mxu0 0
    %143 = vmatpush.bf16.msra.mxu0 0
    %144 = vmatpush.bf16.msra.mxu0 0
    %145 = vmatpush.bf16.msra.mxu0 0
    %146 = vmatpush.bf16.msra.mxu0 0
    %147 = vmatpush.bf16.msra.mxu0 0
    %148 = vmatpush.bf16.msra.mxu0 %v132
    %149 = vmatpush.bf16.msra.mxu0 %v130
    %150 = vmatmul.bf16.gmra.mxu0 %v140
    %v151 = vpop.f32.mrf.mxu0
    %v152 = vadd.f32 %v114, %v151
    %v153 = vpop.f32.mrf.mxu0
    %v154 = vadd.f32 %v114, %v153
    %155 = vdwg.mxu0
    %156 = vmatpush.bf16.msra.mxu0 0
    %157 = vmatpush.bf16.msra.mxu0 0
    %158 = vmatpush.bf16.msra.mxu0 0
    %159 = vmatpush.bf16.msra.mxu0 0
    %160 = vmatpush.bf16.msra.mxu0 0
    %161 = vmatpush.bf16.msra.mxu0 0
    %162 = vmatpush.bf16.msra.mxu0 %v133
    %163 = vmatpush.bf16.msra.mxu0 %v131
    %164 = vmatmul.bf16.gmra.mxu0 %v140
    %v165 = vpop.f32.mrf.mxu0
    %v166 = vadd.f32 %v115, %v165
    %v167 = vpop.f32.mrf.mxu0
    %v168 = vadd.f32 %v115, %v167
    %169 = vdwg.mxu0
    %vm170 = vcmp.gt.f32.partialorder %v152, 0.0
    %vm171 = vcmp.gt.f32.partialorder %v166, 0.0
    %vm172 = vcmp.gt.f32.partialorder %v154, 0.0
    %vm173 = vcmp.gt.f32.partialorder %v168, 0.0
    %v174 = vmul.f32 %v152, 0.01
    %v175 = vmul.f32 %v166, 0.01
    %v176 = vmul.f32 %v154, 0.01
    %v177 = vmul.f32 %v168, 0.01
    %v178 = vsel %vm170, %v152, %v174
    %v179 = vsel %vm171, %v166, %v175
    %v180 = vsel %vm172, %v154, %v176
    %v181 = vsel %vm173, %v168, %v177
    %v182 = vld [vmem:[#allocation2] sm:$0xff]
    %v183 = vld [vmem:[#allocation2 + $0x8] sm:$0xff]
    %v184 = vld [vmem:[#allocation2 + $0x10] sm:$0xff]
    %v185 = vld [vmem:[#allocation2 + $0x18] sm:$0xff]
    %v186 = vld [vmem:[#allocation2 + $0x20] sm:$0xff]
    %v187 = vld [vmem:[#allocation2 + $0x28] sm:$0xff]
    %v188 = vld [vmem:[#allocation2 + $0x30] sm:$0xff]
    %v189 = vld [vmem:[#allocation2 + $0x38] sm:$0xff]
    %v190 = vld [vmem:[#allocation2 + $0x40] sm:$0xff]
    %v191 = vld [vmem:[#allocation2 + $0x48] sm:$0xff]
    %v192 = vld [vmem:[#allocation2 + $0x50] sm:$0xff]
    %v193 = vld [vmem:[#allocation2 + $0x58] sm:$0xff]
    %v194 = vld [vmem:[#allocation2 + $0x60] sm:$0xff]
    %v195 = vld [vmem:[#allocation2 + $0x68] sm:$0xff]
    %v196 = vld [vmem:[#allocation2 + $0x70] sm:$0xff]
    %v197 = vld [vmem:[#allocation2 + $0x78] sm:$0xff]
    %v198 = vld [vmem:[#allocation2 + $0x80] sm:$0xff]
    %v199 = vld [vmem:[#allocation2 + $0x88] sm:$0xff]
    %v200 = vld [vmem:[#allocation2 + $0x90] sm:$0xff]
    %v201 = vld [vmem:[#allocation2 + $0x98] sm:$0xff]
    %v202 = vld [vmem:[%s4] sm:$0x3]
    %v203 = vpack.c.bf16 %v180, %v178
    %v204 = vpack.c.bf16 %v181, %v179
    %v206 = vperm.slane %v202, 0
    %v207 = vperm.slane %v202, 1
    %v230 = vunpack.c.l.b16 %v182
    %v231 = vunpack.c.h.b16 %v182
    %v232 = vunpack.c.l.b16 %v183
    %v233 = vunpack.c.h.b16 %v183
    %v234 = vunpack.c.l.b16 %v184
    %v235 = vunpack.c.h.b16 %v184
    %v236 = vunpack.c.l.b16 %v185
    %v237 = vunpack.c.h.b16 %v185
    %v238 = vunpack.c.l.b16 %v186
    %v239 = vunpack.c.h.b16 %v186
    %v240 = vunpack.c.l.b16 %v187
    %v241 = vunpack.c.h.b16 %v187
    %v242 = vunpack.c.l.b16 %v188
    %v243 = vunpack.c.h.b16 %v188
    %v244 = vunpack.c.l.b16 %v189
    %v245 = vunpack.c.h.b16 %v189
    %v246 = vunpack.c.l.b16 %v190
    %v247 = vunpack.c.h.b16 %v190
    %v248 = vunpack.c.l.b16 %v191
    %v249 = vunpack.c.h.b16 %v191
    %v250 = vunpack.c.l.b16 %v192
    %v251 = vunpack.c.h.b16 %v192
    %v252 = vunpack.c.l.b16 %v193
    %v253 = vunpack.c.h.b16 %v193
    %v254 = vunpack.c.l.b16 %v194
    %v255 = vunpack.c.h.b16 %v194
    %v256 = vunpack.c.l.b16 %v195
    %v257 = vunpack.c.h.b16 %v195
    %v258 = vunpack.c.l.b16 %v196
    %v259 = vunpack.c.h.b16 %v196
    %v260 = vunpack.c.l.b16 %v197
    %v261 = vunpack.c.h.b16 %v197
    %v262 = vunpack.c.l.b16 %v198
    %v263 = vunpack.c.h.b16 %v198
    %v264 = vunpack.c.l.b16 %v199
    %v265 = vunpack.c.h.b16 %v199
    %v266 = vunpack.c.l.b16 %v200
    %v267 = vunpack.c.h.b16 %v200
    %v268 = vunpack.c.l.b16 %v201
    %v269 = vunpack.c.h.b16 %v201
    %v270 = vpack.c.b16 %v232, %v230
    %v271 = vpack.c.b16 %v233, %v231
    %v272 = vpack.c.b16 %v236, %v234
    %v273 = vpack.c.b16 %v237, %v235
    %v274 = vpack.c.b16 %v240, %v238
    %v275 = vpack.c.b16 %v241, %v239
    %v276 = vpack.c.b16 %v244, %v242
    %v277 = vpack.c.b16 %v245, %v243
    %v278 = vpack.c.b16 %v248, %v246
    %v279 = vpack.c.b16 %v249, %v247
    %v280 = vpack.c.b16 %v252, %v250
    %v281 = vpack.c.b16 %v253, %v251
    %v282 = vpack.c.b16 %v256, %v254
    %v283 = vpack.c.b16 %v257, %v255
    %v284 = vpack.c.b16 %v260, %v258
    %v285 = vpack.c.b16 %v261, %v259
    %v286 = vpack.c.b16 %v264, %v262
    %v287 = vpack.c.b16 %v265, %v263
    %v288 = vpack.c.b16 %v268, %v266
    %v289 = vpack.c.b16 %v269, %v267
    %v311 = vsel %vm138, %v204, 0
    %313 = vmatpush.bf16.msra.mxu0 %v284
    %314 = vmatpush.bf16.msra.mxu0 %v282
    %315 = vmatpush.bf16.msra.mxu0 %v280
    %316 = vmatpush.bf16.msra.mxu0 %v278
    %317 = vmatpush.bf16.msra.mxu0 %v276
    %318 = vmatpush.bf16.msra.mxu0 %v274
    %319 = vmatpush.bf16.msra.mxu0 %v272
    %320 = vmatpush.bf16.msra.mxu0 %v270
    %321 = vmatmul.bf16.gmra.mxu0 %v203
    %v322 = vpop.f32.mrf.mxu0
    %v323 = vadd.f32 %v206, %v322
    %v324 = vpop.f32.mrf.mxu0
    %v325 = vadd.f32 %v206, %v324
    %326 = vdwg.mxu0
    %327 = vmatpush.bf16.msra.mxu0 0
    %328 = vmatpush.bf16.msra.mxu0 0
    %329 = vmatpush.bf16.msra.mxu0 0
    %330 = vmatpush.bf16.msra.mxu0 0
    %331 = vmatpush.bf16.msra.mxu0 0
    %332 = vmatpush.bf16.msra.mxu0 0
    %333 = vmatpush.bf16.msra.mxu0 %v288
    %334 = vmatpush.bf16.msra.mxu0 %v286
    %335 = vmatmul.bf16.gmra.mxu0 %v311
    %v336 = vpop.f32.mrf.mxu0
    %v337 = vadd.f32 %v323, %v336
    %v338 = vpop.f32.mrf.mxu0
    %v339 = vadd.f32 %v325, %v338
    %340 = vdwg.mxu0
    %341 = vmatpush.bf16.msra.mxu0 %v285
    %342 = vmatpush.bf16.msra.mxu0 %v283
    %343 = vmatpush.bf16.msra.mxu0 %v281
    %344 = vmatpush.bf16.msra.mxu0 %v279
    %345 = vmatpush.bf16.msra.mxu0 %v277
    %346 = vmatpush.bf16.msra.mxu0 %v275
    %347 = vmatpush.bf16.msra.mxu0 %v273
    %348 = vmatpush.bf16.msra.mxu0 %v271
    %349 = vmatmul.bf16.gmra.mxu0 %v203
    %v350 = vpop.f32.mrf.mxu0
    %v351 = vadd.f32 %v207, %v350
    %v352 = vpop.f32.mrf.mxu0
    %v353 = vadd.f32 %v207, %v352
    %354 = vdwg.mxu0
    %355 = vmatpush.bf16.msra.mxu0 0
    %356 = vmatpush.bf16.msra.mxu0 0
    %357 = vmatpush.bf16.msra.mxu0 0
    %358 = vmatpush.bf16.msra.mxu0 0
    %359 = vmatpush.bf16.msra.mxu0 0
    %360 = vmatpush.bf16.msra.mxu0 0
    %361 = vmatpush.bf16.msra.mxu0 %v289
    %362 = vmatpush.bf16.msra.mxu0 %v287
    %363 = vmatmul.bf16.gmra.mxu0 %v311
    %v364 = vpop.f32.mrf.mxu0
    %v365 = vadd.f32 %v351, %v364
    %v366 = vpop.f32.mrf.mxu0
    %v367 = vadd.f32 %v353, %v366
    %368 = vdwg.mxu0
    %vm369 = vcmp.gt.f32.partialorder %v337, 0.0
    %vm370 = vcmp.gt.f32.partialorder %v365, 0.0
    %vm371 = vcmp.gt.f32.partialorder %v339, 0.0
    %vm372 = vcmp.gt.f32.partialorder %v367, 0.0
    %v373 = vmul.f32 %v337, 0.01
    %v374 = vmul.f32 %v365, 0.01
    %v375 = vmul.f32 %v339, 0.01
    %v376 = vmul.f32 %v367, 0.01
    %v377 = vsel %vm369, %v337, %v373
    %v378 = vsel %vm370, %v365, %v374
    %v379 = vsel %vm371, %v339, %v375
    %v380 = vsel %vm372, %v367, %v376
    %v381 = vld [vmem:[#allocation5] sm:$0xff]
    %v382 = vld [vmem:[#allocation5 + $0x8] sm:$0xff]
    %v383 = vld [vmem:[#allocation5 + $0x10] sm:$0xff]
    %v384 = vld [vmem:[#allocation5 + $0x18] sm:$0xff]
    %v385 = vld [vmem:[#allocation5 + $0x20] sm:$0xff]
    %v386 = vld [vmem:[#allocation5 + $0x28] sm:$0xff]
    %v387 = vld [vmem:[#allocation5 + $0x30] sm:$0xff]
    %v388 = vld [vmem:[#allocation5 + $0x38] sm:$0xff]
    %v389 = vld [vmem:[#allocation5 + $0x40] sm:$0xff]
    %v390 = vld [vmem:[#allocation5 + $0x48] sm:$0xff]
    %v391 = vld [vmem:[#allocation5 + $0x50] sm:$0xff]
    %v392 = vld [vmem:[#allocation5 + $0x58] sm:$0xff]
    %v393 = vld [vmem:[#allocation5 + $0x60] sm:$0xff]
    %v394 = vld [vmem:[#allocation5 + $0x68] sm:$0xff]
    %v395 = vld [vmem:[#allocation5 + $0x70] sm:$0xff]
    %v396 = vld [vmem:[#allocation5 + $0x78] sm:$0xff]
    %v397 = vld [vmem:[#allocation5 + $0x80] sm:$0xff]
    %v398 = vld [vmem:[#allocation5 + $0x88] sm:$0xff]
    %v399 = vld [vmem:[#allocation5 + $0x90] sm:$0xff]
    %v400 = vld [vmem:[#allocation5 + $0x98] sm:$0xff]
    %v401 = vld [vmem:[%s6] sm:$0x3]
    %v402 = vpack.c.bf16 %v379, %v377
    %v403 = vpack.c.bf16 %v380, %v378
    %v405 = vperm.slane %v401, 0
    %v406 = vperm.slane %v401, 1
    %v429 = vunpack.c.l.b16 %v381
    %v430 = vunpack.c.h.b16 %v381
    %v431 = vunpack.c.l.b16 %v382
    %v432 = vunpack.c.h.b16 %v382
    %v433 = vunpack.c.l.b16 %v383
    %v434 = vunpack.c.h.b16 %v383
    %v435 = vunpack.c.l.b16 %v384
    %v436 = vunpack.c.h.b16 %v384
    %v437 = vunpack.c.l.b16 %v385
    %v438 = vunpack.c.h.b16 %v385
    %v439 = vunpack.c.l.b16 %v386
    %v440 = vunpack.c.h.b16 %v386
    %v441 = vunpack.c.l.b16 %v387
    %v442 = vunpack.c.h.b16 %v387
    %v443 = vunpack.c.l.b16 %v388
    %v444 = vunpack.c.h.b16 %v388
    %v445 = vunpack.c.l.b16 %v389
    %v446 = vunpack.c.h.b16 %v389
    %v447 = vunpack.c.l.b16 %v390
    %v448 = vunpack.c.h.b16 %v390
    %v449 = vunpack.c.l.b16 %v391
    %v450 = vunpack.c.h.b16 %v391
    %v451 = vunpack.c.l.b16 %v392
    %v452 = vunpack.c.h.b16 %v392
    %v453 = vunpack.c.l.b16 %v393
    %v454 = vunpack.c.h.b16 %v393
    %v455 = vunpack.c.l.b16 %v394
    %v456 = vunpack.c.h.b16 %v394
    %v457 = vunpack.c.l.b16 %v395
    %v458 = vunpack.c.h.b16 %v395
    %v459 = vunpack.c.l.b16 %v396
    %v460 = vunpack.c.h.b16 %v396
    %v461 = vunpack.c.l.b16 %v397
    %v462 = vunpack.c.h.b16 %v397
    %v463 = vunpack.c.l.b16 %v398
    %v464 = vunpack.c.h.b16 %v398
    %v465 = vunpack.c.l.b16 %v399
    %v466 = vunpack.c.h.b16 %v399
    %v467 = vunpack.c.l.b16 %v400
    %v468 = vunpack.c.h.b16 %v400
    %v469 = vpack.c.b16 %v431, %v429
    %v470 = vpack.c.b16 %v432, %v430
    %v471 = vpack.c.b16 %v435, %v433
    %v472 = vpack.c.b16 %v436, %v434
    %v473 = vpack.c.b16 %v439, %v437
    %v474 = vpack.c.b16 %v440, %v438
    %v475 = vpack.c.b16 %v443, %v441
    %v476 = vpack.c.b16 %v444, %v442
    %v477 = vpack.c.b16 %v447, %v445
    %v478 = vpack.c.b16 %v448, %v446
    %v479 = vpack.c.b16 %v451, %v449
    %v480 = vpack.c.b16 %v452, %v450
    %v481 = vpack.c.b16 %v455, %v453
    %v482 = vpack.c.b16 %v456, %v454
    %v483 = vpack.c.b16 %v459, %v457
    %v484 = vpack.c.b16 %v460, %v458
    %v485 = vpack.c.b16 %v463, %v461
    %v486 = vpack.c.b16 %v464, %v462
    %v487 = vpack.c.b16 %v467, %v465
    %v488 = vpack.c.b16 %v468, %v466
    %v510 = vsel %vm138, %v403, 0
    %512 = vmatpush.bf16.msra.mxu0 %v483
    %513 = vmatpush.bf16.msra.mxu0 %v481
    %514 = vmatpush.bf16.msra.mxu0 %v479
    %515 = vmatpush.bf16.msra.mxu0 %v477
    %516 = vmatpush.bf16.msra.mxu0 %v475
    %517 = vmatpush.bf16.msra.mxu0 %v473
    %518 = vmatpush.bf16.msra.mxu0 %v471
    %519 = vmatpush.bf16.msra.mxu0 %v469
    %520 = vmatmul.bf16.gmra.mxu0 %v402
    %v521 = vpop.f32.mrf.mxu0
    %v522 = vadd.f32 %v405, %v521
    %v523 = vpop.f32.mrf.mxu0
    %v524 = vadd.f32 %v405, %v523
    %525 = vdwg.mxu0
    %526 = vmatpush.bf16.msra.mxu0 0
    %527 = vmatpush.bf16.msra.mxu0 0
    %528 = vmatpush.bf16.msra.mxu0 0
    %529 = vmatpush.bf16.msra.mxu0 0
    %530 = vmatpush.bf16.msra.mxu0 0
    %531 = vmatpush.bf16.msra.mxu0 0
    %532 = vmatpush.bf16.msra.mxu0 %v487
    %533 = vmatpush.bf16.msra.mxu0 %v485
    %534 = vmatmul.bf16.gmra.mxu0 %v510
    %v535 = vpop.f32.mrf.mxu0
    %v536 = vadd.f32 %v522, %v535
    %v537 = vpop.f32.mrf.mxu0
    %v538 = vadd.f32 %v524, %v537
    %539 = vdwg.mxu0
    %540 = vmatpush.bf16.msra.mxu0 %v484
    %541 = vmatpush.bf16.msra.mxu0 %v482
    %542 = vmatpush.bf16.msra.mxu0 %v480
    %543 = vmatpush.bf16.msra.mxu0 %v478
    %544 = vmatpush.bf16.msra.mxu0 %v476
    %545 = vmatpush.bf16.msra.mxu0 %v474
    %546 = vmatpush.bf16.msra.mxu0 %v472
    %547 = vmatpush.bf16.msra.mxu0 %v470
    %548 = vmatmul.bf16.gmra.mxu0 %v402
    %v549 = vpop.f32.mrf.mxu0
    %v550 = vadd.f32 %v406, %v549
    %v551 = vpop.f32.mrf.mxu0
    %v552 = vadd.f32 %v406, %v551
    %553 = vdwg.mxu0
    %554 = vmatpush.bf16.msra.mxu0 0
    %555 = vmatpush.bf16.msra.mxu0 0
    %556 = vmatpush.bf16.msra.mxu0 0
    %557 = vmatpush.bf16.msra.mxu0 0
    %558 = vmatpush.bf16.msra.mxu0 0
    %559 = vmatpush.bf16.msra.mxu0 0
    %560 = vmatpush.bf16.msra.mxu0 %v488
    %561 = vmatpush.bf16.msra.mxu0 %v486
    %562 = vmatmul.bf16.gmra.mxu0 %v510
    %v563 = vpop.f32.mrf.mxu0
    %v564 = vadd.f32 %v550, %v563
    %v565 = vpop.f32.mrf.mxu0
    %v566 = vadd.f32 %v552, %v565
    %567 = vdwg.mxu0
    %vm568 = vcmp.gt.f32.partialorder %v536, 0.0
    %vm569 = vcmp.gt.f32.partialorder %v564, 0.0
    %vm570 = vcmp.gt.f32.partialorder %v538, 0.0
    %vm571 = vcmp.gt.f32.partialorder %v566, 0.0
    %v572 = vmul.f32 %v536, 0.01
    %v573 = vmul.f32 %v564, 0.01
    %v574 = vmul.f32 %v538, 0.01
    %v575 = vmul.f32 %v566, 0.01
    %v576 = vsel %vm568, %v536, %v572
    %v577 = vsel %vm569, %v564, %v573
    %v578 = vsel %vm570, %v538, %v574
    %v579 = vsel %vm571, %v566, %v575
    %v580 = vld [vmem:[#allocation7] sm:$0xff]
    %v581 = vld [vmem:[#allocation7 + $0x8] sm:$0xff]
    %v582 = vld [vmem:[#allocation7 + $0x10] sm:$0xff]
    %v583 = vld [vmem:[#allocation7 + $0x18] sm:$0xff]
    %v584 = vld [vmem:[#allocation7 + $0x20] sm:$0xff]
    %v585 = vld [vmem:[#allocation7 + $0x28] sm:$0xff]
    %v586 = vld [vmem:[#allocation7 + $0x30] sm:$0xff]
    %v587 = vld [vmem:[#allocation7 + $0x38] sm:$0xff]
    %v588 = vld [vmem:[#allocation7 + $0x40] sm:$0xff]
    %v589 = vld [vmem:[#allocation7 + $0x48] sm:$0xff]
    %v590 = vld [vmem:[#allocation7 + $0x50] sm:$0xff]
    %v591 = vld [vmem:[#allocation7 + $0x58] sm:$0xff]
    %v592 = vld [vmem:[#allocation7 + $0x60] sm:$0xff]
    %v593 = vld [vmem:[#allocation7 + $0x68] sm:$0xff]
    %v594 = vld [vmem:[#allocation7 + $0x70] sm:$0xff]
    %v595 = vld [vmem:[#allocation7 + $0x78] sm:$0xff]
    %v596 = vld [vmem:[#allocation7 + $0x80] sm:$0xff]
    %v597 = vld [vmem:[#allocation7 + $0x88] sm:$0xff]
    %v598 = vld [vmem:[#allocation7 + $0x90] sm:$0xff]
    %v599 = vld [vmem:[#allocation7 + $0x98] sm:$0xff]
    %v600 = vld [vmem:[%s8] sm:$0x3]
    %v601 = vpack.c.bf16 %v578, %v576
    %v602 = vpack.c.bf16 %v579, %v577
    %v604 = vperm.slane %v600, 0
    %v605 = vperm.slane %v600, 1
    %v628 = vunpack.c.l.b16 %v580
    %v629 = vunpack.c.h.b16 %v580
    %v630 = vunpack.c.l.b16 %v581
    %v631 = vunpack.c.h.b16 %v581
    %v632 = vunpack.c.l.b16 %v582
    %v633 = vunpack.c.h.b16 %v582
    %v634 = vunpack.c.l.b16 %v583
    %v635 = vunpack.c.h.b16 %v583
    %v636 = vunpack.c.l.b16 %v584
    %v637 = vunpack.c.h.b16 %v584
    %v638 = vunpack.c.l.b16 %v585
    %v639 = vunpack.c.h.b16 %v585
    %v640 = vunpack.c.l.b16 %v586
    %v641 = vunpack.c.h.b16 %v586
    %v642 = vunpack.c.l.b16 %v587
    %v643 = vunpack.c.h.b16 %v587
    %v644 = vunpack.c.l.b16 %v588
    %v645 = vunpack.c.h.b16 %v588
    %v646 = vunpack.c.l.b16 %v589
    %v647 = vunpack.c.h.b16 %v589
    %v648 = vunpack.c.l.b16 %v590
    %v649 = vunpack.c.h.b16 %v590
    %v650 = vunpack.c.l.b16 %v591
    %v651 = vunpack.c.h.b16 %v591
    %v652 = vunpack.c.l.b16 %v592
    %v653 = vunpack.c.h.b16 %v592
    %v654 = vunpack.c.l.b16 %v593
    %v655 = vunpack.c.h.b16 %v593
    %v656 = vunpack.c.l.b16 %v594
    %v657 = vunpack.c.h.b16 %v594
    %v658 = vunpack.c.l.b16 %v595
    %v659 = vunpack.c.h.b16 %v595
    %v660 = vunpack.c.l.b16 %v596
    %v661 = vunpack.c.h.b16 %v596
    %v662 = vunpack.c.l.b16 %v597
    %v663 = vunpack.c.h.b16 %v597
    %v664 = vunpack.c.l.b16 %v598
    %v665 = vunpack.c.h.b16 %v598
    %v666 = vunpack.c.l.b16 %v599
    %v667 = vunpack.c.h.b16 %v599
    %v668 = vpack.c.b16 %v630, %v628
    %v669 = vpack.c.b16 %v631, %v629
    %v670 = vpack.c.b16 %v634, %v632
    %v671 = vpack.c.b16 %v635, %v633
    %v672 = vpack.c.b16 %v638, %v636
    %v673 = vpack.c.b16 %v639, %v637
    %v674 = vpack.c.b16 %v642, %v640
    %v675 = vpack.c.b16 %v643, %v641
    %v676 = vpack.c.b16 %v646, %v644
    %v677 = vpack.c.b16 %v647, %v645
    %v678 = vpack.c.b16 %v650, %v648
    %v679 = vpack.c.b16 %v651, %v649
    %v680 = vpack.c.b16 %v654, %v652
    %v681 = vpack.c.b16 %v655, %v653
    %v682 = vpack.c.b16 %v658, %v656
    %v683 = vpack.c.b16 %v659, %v657
    %v684 = vpack.c.b16 %v662, %v660
    %v685 = vpack.c.b16 %v663, %v661
    %v686 = vpack.c.b16 %v666, %v664
    %v687 = vpack.c.b16 %v667, %v665
    %v709 = vsel %vm138, %v602, 0
    %711 = vmatpush.bf16.msra.mxu0 %v682
    %712 = vmatpush.bf16.msra.mxu0 %v680
    %713 = vmatpush.bf16.msra.mxu0 %v678
    %714 = vmatpush.bf16.msra.mxu0 %v676
    %715 = vmatpush.bf16.msra.mxu0 %v674
    %716 = vmatpush.bf16.msra.mxu0 %v672
    %717 = vmatpush.bf16.msra.mxu0 %v670
    %718 = vmatpush.bf16.msra.mxu0 %v668
    %719 = vmatmul.bf16.gmra.mxu0 %v601
    %v720 = vpop.f32.mrf.mxu0
    %v721 = vadd.f32 %v604, %v720
    %v722 = vpop.f32.mrf.mxu0
    %v723 = vadd.f32 %v604, %v722
    %724 = vdwg.mxu0
    %725 = vmatpush.bf16.msra.mxu0 0
    %726 = vmatpush.bf16.msra.mxu0 0
    %727 = vmatpush.bf16.msra.mxu0 0
    %728 = vmatpush.bf16.msra.mxu0 0
    %729 = vmatpush.bf16.msra.mxu0 0
    %730 = vmatpush.bf16.msra.mxu0 0
    %731 = vmatpush.bf16.msra.mxu0 %v686
    %732 = vmatpush.bf16.msra.mxu0 %v684
    %733 = vmatmul.bf16.gmra.mxu0 %v709
    %v734 = vpop.f32.mrf.mxu0
    %v735 = vadd.f32 %v721, %v734
    %v736 = vpop.f32.mrf.mxu0
    %v737 = vadd.f32 %v723, %v736
    %738 = vdwg.mxu0
    %739 = vmatpush.bf16.msra.mxu0 %v683
    %740 = vmatpush.bf16.msra.mxu0 %v681
    %741 = vmatpush.bf16.msra.mxu0 %v679
    %742 = vmatpush.bf16.msra.mxu0 %v677
    %743 = vmatpush.bf16.msra.mxu0 %v675
    %744 = vmatpush.bf16.msra.mxu0 %v673
    %745 = vmatpush.bf16.msra.mxu0 %v671
    %746 = vmatpush.bf16.msra.mxu0 %v669
    %747 = vmatmul.bf16.gmra.mxu0 %v601
    %v748 = vpop.f32.mrf.mxu0
    %v749 = vadd.f32 %v605, %v748
    %v750 = vpop.f32.mrf.mxu0
    %v751 = vadd.f32 %v605, %v750
    %752 = vdwg.mxu0
    %753 = vmatpush.bf16.msra.mxu0 0
    %754 = vmatpush.bf16.msra.mxu0 0
    %755 = vmatpush.bf16.msra.mxu0 0
    %756 = vmatpush.bf16.msra.mxu0 0
    %757 = vmatpush.bf16.msra.mxu0 0
    %758 = vmatpush.bf16.msra.mxu0 0
    %759 = vmatpush.bf16.msra.mxu0 %v687
    %760 = vmatpush.bf16.msra.mxu0 %v685
    %761 = vmatmul.bf16.gmra.mxu0 %v709
    %v762 = vpop.f32.mrf.mxu0
    %v763 = vadd.f32 %v749, %v762
    %v764 = vpop.f32.mrf.mxu0
    %v765 = vadd.f32 %v751, %v764
    %766 = vdwg.mxu0
    %vm767 = vcmp.gt.f32.partialorder %v735, 0.0
    %vm768 = vcmp.gt.f32.partialorder %v763, 0.0
    %vm769 = vcmp.gt.f32.partialorder %v737, 0.0
    %vm770 = vcmp.gt.f32.partialorder %v765, 0.0
    %v771 = vmul.f32 %v735, 0.01
    %v772 = vmul.f32 %v763, 0.01
    %v773 = vmul.f32 %v737, 0.01
    %v774 = vmul.f32 %v765, 0.01
    %v775 = vsel %vm767, %v735, %v771
    %v776 = vsel %vm768, %v763, %v772
    %v777 = vsel %vm769, %v737, %v773
    %v778 = vsel %vm770, %v765, %v774
    %v779 = vld [vmem:[%s9] sm:$0xf]
    %v780 = vld [vmem:[%s9 + $0x4] sm:$0xf]
    %v781 = vld [vmem:[%s9 + $0x8] sm:$0xf]
    %v782 = vld [vmem:[%s9 + $0xc] sm:$0xf]
    %v783 = vld [vmem:[%s9 + $0x10] sm:$0xf]
    %v784 = vld [vmem:[%s9 + $0x14] sm:$0xf]
    %v785 = vld [vmem:[%s9 + $0x18] sm:$0xf]
    %v786 = vld [vmem:[%s9 + $0x1c] sm:$0xf]
    %v787 = vld [vmem:[%s9 + $0x20] sm:$0xf]
    %v788 = vld [vmem:[%s9 + $0x24] sm:$0xf]
    %v789 = vld [vmem:[%s9 + $0x28] sm:$0xf]
    %v790 = vld [vmem:[%s9 + $0x2c] sm:$0xf]
    %v791 = vld [vmem:[%s9 + $0x30] sm:$0xf]
    %v792 = vld [vmem:[%s9 + $0x34] sm:$0xf]
    %v793 = vld [vmem:[%s9 + $0x38] sm:$0xf]
    %v794 = vld [vmem:[%s9 + $0x3c] sm:$0xf]
    %v795 = vld [vmem:[%s9 + $0x40] sm:$0xf]
    %v796 = vld [vmem:[%s9 + $0x44] sm:$0xf]
    %v797 = vld [vmem:[%s9 + $0x48] sm:$0xf]
    %v798 = vld [vmem:[%s9 + $0x4c] sm:$0xf]
    %v799 = vld [vmem:[%s10] sm:$0x1]
    %v800 = vpack.c.bf16 %v777, %v775
    %v801 = vpack.c.bf16 %v778, %v776
    %v803 = vperm.slane %v799, 0
    %v825 = vunpack.c.l.b16 %v779
    %v826 = vunpack.c.l.b16 %v780
    %v827 = vunpack.c.l.b16 %v781
    %v828 = vunpack.c.l.b16 %v782
    %v829 = vunpack.c.l.b16 %v783
    %v830 = vunpack.c.l.b16 %v784
    %v831 = vunpack.c.l.b16 %v785
    %v832 = vunpack.c.l.b16 %v786
    %v833 = vunpack.c.l.b16 %v787
    %v834 = vunpack.c.l.b16 %v788
    %v835 = vunpack.c.l.b16 %v789
    %v836 = vunpack.c.l.b16 %v790
    %v837 = vunpack.c.l.b16 %v791
    %v838 = vunpack.c.l.b16 %v792
    %v839 = vunpack.c.l.b16 %v793
    %v840 = vunpack.c.l.b16 %v794
    %v841 = vunpack.c.l.b16 %v795
    %v842 = vunpack.c.l.b16 %v796
    %v843 = vunpack.c.l.b16 %v797
    %v844 = vunpack.c.l.b16 %v798
    %v845 = vpack.c.b16 %v826, %v825
    %v846 = vpack.c.b16 %v828, %v827
    %v847 = vpack.c.b16 %v830, %v829
    %v848 = vpack.c.b16 %v832, %v831
    %v849 = vpack.c.b16 %v834, %v833
    %v850 = vpack.c.b16 %v836, %v835
    %v851 = vpack.c.b16 %v838, %v837
    %v852 = vpack.c.b16 %v840, %v839
    %v853 = vpack.c.b16 %v842, %v841
    %v854 = vpack.c.b16 %v844, %v843
    %v866 = vsel %vm138, %v801, 0
    %868 = vmatpush.bf16.msra.mxu0 %v852
    %869 = vmatpush.bf16.msra.mxu0 %v851
    %870 = vmatpush.bf16.msra.mxu0 %v850
    %871 = vmatpush.bf16.msra.mxu0 %v849
    %872 = vmatpush.bf16.msra.mxu0 %v848
    %873 = vmatpush.bf16.msra.mxu0 %v847
    %874 = vmatpush.bf16.msra.mxu0 %v846
    %875 = vmatpush.bf16.msra.mxu0 %v845
    %876 = vmatmul.bf16.gmra.mxu0 %v800
    %v877 = vpop.f32.mrf.mxu0
    %v878 = vadd.f32 %v803, %v877
    %v879 = vpop.f32.mrf.mxu0
    %v880 = vadd.f32 %v803, %v879
    %881 = vdwg.mxu0
    %882 = vmatpush.bf16.msra.mxu0 0
    %883 = vmatpush.bf16.msra.mxu0 0
    %884 = vmatpush.bf16.msra.mxu0 0
    %885 = vmatpush.bf16.msra.mxu0 0
    %886 = vmatpush.bf16.msra.mxu0 0
    %887 = vmatpush.bf16.msra.mxu0 0
    %888 = vmatpush.bf16.msra.mxu0 %v854
    %889 = vmatpush.bf16.msra.mxu0 %v853
    %890 = vmatmul.bf16.gmra.mxu0 %v866
    %v891 = vpop.f32.mrf.mxu0
    %v892 = vadd.f32 %v878, %v891
    %v893 = vpop.f32.mrf.mxu0
    %v894 = vadd.f32 %v880, %v893
    %895 = vdwg.mxu0
    %vm896 = vcmp.gt.f32.partialorder %v892, 0.0
    %vm897 = vcmp.gt.f32.partialorder %v894, 0.0
    %v898 = vmul.f32 %v892, 0.01
    %v899 = vmul.f32 %v894, 0.01
    %v900 = vsel %vm896, %v892, %v898
    %v901 = vsel %vm897, %v894, %v899
    %v902 = vld [vmem:[%s11] sm:$0xf]
    %v903 = vld [vmem:[%s11 + $0x4] sm:$0xf]
    %v904 = vld [vmem:[%s11 + $0x8] sm:$0xf]
    %v905 = vld [vmem:[%s11 + $0xc] sm:$0xf]
    %v906 = vld [vmem:[%s11 + $0x10] sm:$0xf]
    %v907 = vld [vmem:[%s11 + $0x14] sm:$0xf]
    %v908 = vld [vmem:[%s11 + $0x18] sm:$0xf]
    %v909 = vld [vmem:[%s11 + $0x1c] sm:$0xf]
    %v910 = vld [vmem:[%s12] sm:$0x1]
    %v911 = vpack.c.bf16 %v901, %v900
    %v913 = vperm.slane %v910, 0
    %v923 = vunpack.c.l.b16 %v902
    %v924 = vunpack.c.l.b16 %v903
    %v925 = vunpack.c.l.b16 %v904
    %v926 = vunpack.c.l.b16 %v905
    %v927 = vunpack.c.l.b16 %v906
    %v928 = vunpack.c.l.b16 %v907
    %v929 = vunpack.c.l.b16 %v908
    %v930 = vunpack.c.l.b16 %v909
    %v931 = vpack.c.b16 %v924, %v923
    %v932 = vpack.c.b16 %v926, %v925
    %v933 = vpack.c.b16 %v928, %v927
    %v934 = vpack.c.b16 %v930, %v929
    %vm939 = vcmask 523264
    %v941 = vsel %vm939, %v911, 0
    %943 = vmatpush.bf16.msra.mxu0 0
    %944 = vmatpush.bf16.msra.mxu0 0
    %945 = vmatpush.bf16.msra.mxu0 0
    %946 = vmatpush.bf16.msra.mxu0 0
    %947 = vmatpush.bf16.msra.mxu0 %v934
    %948 = vmatpush.bf16.msra.mxu0 %v933
    %949 = vmatpush.bf16.msra.mxu0 %v932
    %950 = vmatpush.bf16.msra.mxu0 %v931
    %951 = vmatmul.bf16.gmra.mxu0 %v941
    %v952 = vpop.f32.mrf.mxu0
    %v953 = vadd.f32 %v913, %v952
    %v954 = vpop.f32.mrf.mxu0
    %v955 = vadd.f32 %v913, %v954
    %956 = vdwg.mxu0
    %vm957 = vcmp.gt.f32.partialorder %v953, 0.0
    %vm958 = vcmp.gt.f32.partialorder %v955, 0.0
    %v959 = vmul.f32 %v953, 0.01
    %v960 = vmul.f32 %v955, 0.01
    %v961 = vsel %vm957, %v953, %v959
    %v962 = vsel %vm958, %v955, %v960
    %v963 = vld [vmem:[%s13] sm:$0xf]
    %v964 = vld [vmem:[%s13 + $0x4] sm:$0xf]
    %v965 = vld [vmem:[%s13 + $0x8] sm:$0xf]
    %v966 = vld [vmem:[%s13 + $0xc] sm:$0xf]
    %v967 = vld [vmem:[%s14] sm:$0x1]
    %v968 = vpack.c.bf16 %v962, %v961
    %v970 = vperm.slane %v967, 0
    %v976 = vunpack.c.l.b16 %v963
    %v977 = vunpack.c.l.b16 %v964
    %v978 = vunpack.c.l.b16 %v965
    %v979 = vunpack.c.l.b16 %v966
    %v980 = vpack.c.b16 %v977, %v976
    %v981 = vpack.c.b16 %v979, %v978
    %v985 = vsel %vm138, %v968, 0
    %987 = vmatpush.bf16.msra.mxu0 0
    %988 = vmatpush.bf16.msra.mxu0 0
    %989 = vmatpush.bf16.msra.mxu0 0
    %990 = vmatpush.bf16.msra.mxu0 0
    %991 = vmatpush.bf16.msra.mxu0 0
    %992 = vmatpush.bf16.msra.mxu0 0
    %993 = vmatpush.bf16.msra.mxu0 %v981
    %994 = vmatpush.bf16.msra.mxu0 %v980
    %995 = vmatmul.bf16.gmra.mxu0 %v985
    %v996 = vpop.f32.mrf.mxu0
    %v997 = vadd.f32 %v970, %v996
    %v998 = vpop.f32.mrf.mxu0
    %v999 = vadd.f32 %v970, %v998
    %1000 = vdwg.mxu0
    %vm1001 = vcmp.gt.f32.partialorder %v997, 0.0
    %vm1002 = vcmp.gt.f32.partialorder %v999, 0.0
    %v1003 = vmul.f32 %v997, 0.01
    %v1004 = vmul.f32 %v999, 0.01
    %v1005 = vsel %vm1001, %v997, %v1003
    %v1006 = vsel %vm1002, %v999, %v1004
    %v1007 = vld [vmem:[%s15] sm:$0xf]
    %v1008 = vld [vmem:[%s15 + $0x4] sm:$0xf]
    %v1009 = vld [vmem:[%s16] sm:$0x1]
    %v1010 = vpack.c.bf16 %v1006, %v1005
    %v1012 = vperm.slane %v1009, 0
    %v1016 = vunpack.c.l.b16 %v1007
    %v1017 = vunpack.c.l.b16 %v1008
    %v1018 = vpack.c.b16 %v1017, %v1016
    %vm1020 = vcmask 130048
    %v1022 = vsel %vm1020, %v1010, 0
    %1024 = vmatpush.bf16.msra.mxu0 0
    %1025 = vmatpush.bf16.msra.mxu0 0
    %1026 = vmatpush.bf16.msra.mxu0 0
    %1027 = vmatpush.bf16.msra.mxu0 0
    %1028 = vmatpush.bf16.msra.mxu0 0
    %1029 = vmatpush.bf16.msra.mxu0 0
    %1030 = vmatpush.bf16.msra.mxu0 0
    %1031 = vmatpush.bf16.msra.mxu0 %v1018
    %1032 = vmatmul.bf16.gmra.mxu0 %v1022
    %v1033 = vpop.f32.mrf.mxu0
    %v1034 = vadd.f32 %v1012, %v1033
    %v1035 = vpop.f32.mrf.mxu0
    %v1036 = vadd.f32 %v1012, %v1035
    %1037 = vdwg.mxu0
    %v1038 = vxor.u32 %v1034, 2147483648
    %v1039 = vxor.u32 %v1036, 2147483648
    %v1040 = vmul.f32 %v1038, 1.442695
    %v1041 = vpow.pop %v1040
    %v1042 = vmul.f32 %v1039, 1.442695
    %v1043 = vpow.pop %v1042
    %v1044 = vadd.f32 %v1041, 1.0
    %v1045 = vadd.f32 %v1043, 1.0
    %v1046 = vrcp.pop %v1044
    %v1047 = vmul.f32 %v1044, %v1046
    %v1048 = vsub.f32 1.0, %v1047
    %v1049 = vmul.f32 %v1046, %v1048
    %v1050 = vadd.f32 %v1046, %v1049
    %vm1051 = vweird.f32 %v1044
    %vm1052 = vweird.f32 %v1046
    %vm1053 = vmor %vm1051, %vm1052
    %v1054 = vsel %vm1053, %v1046, %v1050
    %v1055 = vand.u32 2147483647, %v1044
    %vm1056 = vcmp.eq.f32.partialorder %v1055, 8.507059e+37
    %v1057 = vand.u32 %v1044, 2147483648
    %v1058 = vor.u32 1.1754944e-38, %v1057
    %v1059 = vsel %vm1056, %v1058, %v1054
    %v1060 = vmul.f32 1.0, %v1059
    %v1061 = vrcp.pop %v1045
    %v1062 = vmul.f32 %v1045, %v1061
    %v1063 = vsub.f32 1.0, %v1062
    %v1064 = vmul.f32 %v1061, %v1063
    %v1065 = vadd.f32 %v1061, %v1064
    %vm1066 = vweird.f32 %v1045
    %vm1067 = vweird.f32 %v1061
    %vm1068 = vmor %vm1066, %vm1067
    %v1069 = vsel %vm1068, %v1061, %v1065
    %v1070 = vand.u32 2147483647, %v1045
    %vm1071 = vcmp.eq.f32.partialorder %v1070, 8.507059e+37
    %v1072 = vand.u32 %v1045, 2147483648
    %v1073 = vor.u32 1.1754944e-38, %v1072
    %v1074 = vsel %vm1071, %v1073, %v1069
    %v1075 = vmul.f32 1.0, %v1074
    %1076 = vst [vmem:[#allocation8] sm:$0xff] %v1060
    %1077 = vst [vmem:[#allocation8 + $0x8] sm:$0xff] %v1075
    // Predicated region
    $region82: #{tpu_custom_call.1} parent=1 // pred_check
      _
    $region83: #{tpu_custom_call.1} parent=1 // pred_check_branch
      %1079 = sbr.rel (0) target = $region85
    $region84: #{tpu_custom_call.1} parent=1 // pred_region
      %1081 = vsyncadd [#allocation4], 0
      %s1082 = sshll.u32 [#allocation8], 4
      %s1083 = int_to_ptr.vmem [resolvable:$true] %s1082
      %s1084 = sshll.u32 %s17, 4
      %s1085 = int_to_ptr.hbm [resolvable:$true] %s1084
      %1090 = dma.vmem_to_hbm [thread:$0]  %s1083, 256, %s1085, [#allocation4], 128, 128, 8
    $region85: #{tpu_custom_call.1} parent=1 // pred_fallthru
      _
    // Predicated region
    $region86: #{tpu_custom_call.1} parent=1 // pred_check
      _
    $region87: #{tpu_custom_call.1} parent=1 // pred_check_branch
      %1092 = sbr.rel (0) target = $region89
    $region88: #{tpu_custom_call.1} parent=1 // pred_region
      %1094 = dma.done [#allocation4], 256
    $region89: #{tpu_custom_call.1} parent=1 // pred_fallthru
      _
    %1095 = vsyncpa [#allocation3], 1
    %1096 = vsyncpa [#allocation6], 1
    %1097 = vsyncpa [#allocation4], 1

</llo_original>
